<compile_context>
chip_gen: v7x
topology: tpu7x:2x2x1
jax: 0.10.0
libtpu: 0.0.40
codegen_flags: <defaults>
</compile_context>

<pallas_src>
import functools
import math

import jax
import jax.numpy as jnp
from jax import lax
from jax.experimental import pallas as pl
from jax.experimental.pallas import tpu as pltpu

_LANES = 128
_SUBLANES = 16                      # covers f32 (8) and bf16/f16 (16) tiling
_PAD_UNIT = _SUBLANES * _LANES      # 2048 elements
_TWO_LN10_OVER_3 = 2.0 * 2.302585092994046 / 3.0   # 2*ln(10)/3


# ----------------------------------------------------------------------------
# In-kernel helpers
# ----------------------------------------------------------------------------
def _accum_tile(val, o_ref, *, global_t, tile_rows, n_valid, full_valid_tiles,
                need_mask):
    """Reduce a (tile_rows,128) f32 tile into the (8,128) accumulator block."""

    def _add(v):
        # (tile_rows,128) -> (tile_rows//8, 8, 128); axis-0 sum = vreg adds (VPU).
        o_ref[...] += jnp.sum(v.reshape(tile_rows // 8, 8, _LANES), axis=0)

    if not need_mask:
        _add(val)
        return

    is_edge = global_t >= full_valid_tiles     # only edge tiles contain pad/OOB

    @pl.when(jnp.logical_not(is_edge))
    def _():
        _add(val)

    @pl.when(is_edge)
    def _():
        row = lax.broadcasted_iota(jnp.int32, val.shape, 0)
        col = lax.broadcasted_iota(jnp.int32, val.shape, 1)
        flat = (global_t * tile_rows + row) * _LANES + col
        _add(jnp.where(flat < n_valid, val, 0.0))


def _scalar_weight_kernel(params_ref, d_ref, o_ref, *, tile_rows, tiles_per_core,
                          n_valid, full_valid_tiles, need_mask):
    c = pl.program_id(0)
    i = pl.program_id(1)

    @pl.when(i == 0)
    def _():
        o_ref[...] = jnp.zeros_like(o_ref)

    alpha = params_ref[0]                       # precomputed in wrapper (SMEM)
    eps2 = params_ref[1]
    d = d_ref[...].astype(jnp.float32)
    base = d * d + eps2                         # > 0, log is safe
    val = jnp.exp(alpha * jnp.log(base))        # 2 EUP transcendentals / element

    _accum_tile(val, o_ref, global_t=c * tiles_per_core + i, tile_rows=tile_rows,
                n_valid=n_valid, full_valid_tiles=full_valid_tiles,
                need_mask=need_mask)


def _elementwise_weight_kernel(d_ref, w_ref, o_ref, *, tile_rows, tiles_per_core,
                               n_valid, full_valid_tiles, need_mask):
    c = pl.program_id(0)
    i = pl.program_id(1)

    @pl.when(i == 0)
    def _():
        o_ref[...] = jnp.zeros_like(o_ref)

    d = d_ref[...].astype(jnp.float32)
    w = w_ref[...].astype(jnp.float32)
    alpha = w * 0.5
    eps2 = jnp.exp(_TWO_LN10_OVER_3 * (1.0 - 10.0 * w))   # eps^2
    base = d * d + eps2
    val = jnp.exp(alpha * jnp.log(base))

    _accum_tile(val, o_ref, global_t=c * tiles_per_core + i, tile_rows=tile_rows,
                n_valid=n_valid, full_valid_tiles=full_valid_tiles,
                need_mask=need_mask)


# ----------------------------------------------------------------------------
# Wrapper: layout plumbing + pallas_call
# ----------------------------------------------------------------------------
def _flatten_min_pad(x, out_shape, n, pad):
    x = jnp.broadcast_to(x, out_shape)
    if x.dtype.name not in ("float32", "bfloat16", "float16"):
        x = x.astype(jnp.float32)
    x = x.reshape(-1)
    if pad:
        x = jnp.pad(x, (0, pad))
    return x.reshape((n + pad) // _LANES, _LANES)


def charbonnier_ada_pallas(diff, weight, *, max_tile_rows=2048):
    diff = jnp.asarray(diff)
    weight = jnp.asarray(weight)

    out_shape = jnp.broadcast_shapes(diff.shape, weight.shape)
    n = int(math.prod(out_shape)) if out_shape else 1

    pad = (-n) % _PAD_UNIT                    # < 2048 elements; 0 in common cases
    rows = (n + pad) // _LANES                # multiple of 16
    tile_rows = min(max_tile_rows, rows)      # multiple of 16 (both args are)
    tile_elems = tile_rows * _LANES

    num_tiles = pl.cdiv(rows, tile_rows)
    num_cores = 2 if num_tiles >= 2 else 1    # v7x: split across TensorCores
    tiles_per_core = pl.cdiv(num_tiles, num_cores)
    full_valid_tiles = n // tile_elems        # tiles entirely inside valid data
    need_mask = (num_cores * tiles_per_core * tile_elems) != n

    d2 = _flatten_min_pad(diff, out_shape, n, pad)

    def data_index_map(c, i):
        # Clamp so an overshoot tile (odd tile count split over 2 cores) re-reads
        # a valid block; its contribution is fully masked out in-kernel.
        return (jnp.minimum(c * tiles_per_core + i, num_tiles - 1), 0)

    data_spec = pl.BlockSpec((tile_rows, _LANES), data_index_map)
    out_spec = pl.BlockSpec((8, _LANES), lambda c, i: (c, 0))

    common = dict(tile_rows=tile_rows, tiles_per_core=tiles_per_core,
                  n_valid=n, full_valid_tiles=full_valid_tiles,
                  need_mask=need_mask)

    if int(weight.size) == 1:
        # Scalar weight: hoist alpha / eps^2; one streamed input only.
        w = weight.reshape(()).astype(jnp.float32)
        alpha = w * 0.5
        eps2 = jnp.exp(_TWO_LN10_OVER_3 * (1.0 - 10.0 * w))
        params = jnp.stack([alpha, eps2])                       # (2,) f32 -> SMEM
        kernel = functools.partial(_scalar_weight_kernel, **common)
        in_specs = [pl.BlockSpec(memory_space=pltpu.MemorySpace.SMEM), data_spec]
        operands = (params, d2)
        flops = 5 * n
        transcendentals = 2 * n
        bytes_accessed = n * d2.dtype.itemsize + 8
    else:
        w2 = _flatten_min_pad(weight, out_shape, n, pad)
        kernel = functools.partial(_elementwise_weight_kernel, **common)
        in_specs = [data_spec, data_spec]
        operands = (d2, w2)
        flops = 8 * n
        transcendentals = 3 * n
        bytes_accessed = n * (d2.dtype.itemsize + w2.dtype.itemsize)

    partials = pl.pallas_call(
        kernel,
        out_shape=jax.ShapeDtypeStruct((num_cores * 8, _LANES), jnp.float32),
        grid=(num_cores, tiles_per_core),
        in_specs=in_specs,
        out_specs=out_spec,
        compiler_params=pltpu.CompilerParams(
            dimension_semantics=("parallel", "arbitrary")),
        cost_estimate=pl.CostEstimate(
            flops=flops, transcendentals=transcendentals,
            bytes_accessed=bytes_accessed),
    )(*operands)

    # Tiny (<= 2048 element) cross-lane reduce + mean normalization in XLA.
    return jnp.sum(partials) / n


# ----------------------------------------------------------------------------
# Pure-JAX reference (matches the PyTorch forward exactly).
# ----------------------------------------------------------------------------
def charbonnier_ada_ref(diff, weight):
    alpha = weight / 2.0
    epsilon = 10.0 ** (-(10.0 * weight - 1.0) / 3.0)
    return jnp.mean((diff ** 2 + epsilon ** 2) ** alpha)


if __name__ == "__main__":
    key = jax.random.PRNGKey(0)
    k0, k1, k2, k3 = jax.random.split(key, 4)

    fwd = jax.jit(charbonnier_ada_pallas)
    ref = jax.jit(charbonnier_ada_ref)

    # Case 1: elementwise adaptive weight, exactly (8,128)-tileable size (no pad).
    diff = jax.random.normal(k0, (2, 4, 16, 16), jnp.float32)
    weight = jax.random.uniform(k1, (2, 4, 16, 16), jnp.float32,
                                minval=0.1, maxval=1.0)
    out = jax.block_until_ready(fwd(diff, weight))
    expect = jax.block_until_ready(ref(diff, weight))
    err = float(jnp.abs(out - expect))
    if not (err <= 1e-4 * max(1.0, float(jnp.abs(expect)))):
        raise AssertionError(f"mismatch (case 1): got {out}, want {expect}")

    # Case 2: ragged size (in-kernel mask) + scalar weight (SMEM fast path).
    diff2 = jax.random.normal(k2, (2, 3, 7, 5), jnp.float32)
    weight2 = jax.random.uniform(k3, (), jnp.float32, minval=0.2, maxval=0.8)
    out2 = jax.block_until_ready(fwd(diff2, weight2))
    expect2 = jax.block_until_ready(ref(diff2, weight2))
    err2 = float(jnp.abs(out2 - expect2))
    if not (err2 <= 1e-4 * max(1.0, float(jnp.abs(expect2)))):
        raise AssertionError(f"mismatch (case 2): got {out2}, want {expect2}")

    print("KERNEL_OK")
</pallas_src>

<mosaic_0001>
module attributes {stable_mosaic.version = 11 : i64} {
  func.func @_elementwise_weight_kernel(%arg0: i32, %arg1: i32, %arg2: memref<16x128xf32, #tpu.memory_space<vmem>>, %arg3: memref<16x128xf32, #tpu.memory_space<vmem>>, %arg4: memref<8x128xf32, #tpu.memory_space<vmem>>) attributes {dimension_semantics = [#tpu.dimension_semantics<parallel>, #tpu.dimension_semantics<arbitrary>], iteration_bounds = array<i64: 1, 1>, scalar_prefetch = 0 : i64, scratch_operands = 0 : i64, tpu.core_type = #tpu.core_type<tc>, window_params = [{transform_indices = @transform_0, window_bounds = array<i64: 16, 128>}, {transform_indices = @transform_1, window_bounds = array<i64: 16, 128>}, {transform_indices = @transform_2, window_bounds = array<i64: 8, 128>}]} {
    %c0_i32 = arith.constant 0 : i32
    %0 = arith.cmpi eq, %arg1, %c0_i32 : i32
    %1 = arith.extui %0 : i1 to i32
    %c0_i32_0 = arith.constant 0 : i32
    %2 = arith.cmpi ne, %1, %c0_i32_0 : i32
    scf.if %2 {
      %cst_12 = arith.constant 0.000000e+00 : f32
      %24 = vector.broadcast %cst_12 : f32 to vector<8x128xf32>
      %c0_13 = arith.constant 0 : index
      %c0_14 = arith.constant 0 : index
      %25 = vector.load %arg4[%c0_13, %c0_14] : memref<8x128xf32, #tpu.memory_space<vmem>>, vector<8x128xf32>
      tpu.vector_store %arg4[%c0_13, %c0_14], %24 {strides = array<i32>} : memref<8x128xf32, #tpu.memory_space<vmem>>, vector<8x128xf32>,
    } else {
    }
    %c0 = arith.constant 0 : index
    %c0_1 = arith.constant 0 : index
    %3 = vector.load %arg2[%c0, %c0_1] : memref<16x128xf32, #tpu.memory_space<vmem>>, vector<16x128xf32>
    %c0_2 = arith.constant 0 : index
    %c0_3 = arith.constant 0 : index
    %4 = vector.load %arg3[%c0_2, %c0_3] : memref<16x128xf32, #tpu.memory_space<vmem>>, vector<16x128xf32>
    %cst = arith.constant 5.000000e-01 : f32
    %5 = vector.broadcast %cst : f32 to vector<16x128xf32>
    %6 = arith.mulf %4, %5 : vector<16x128xf32>
    %cst_4 = arith.constant 1.000000e+01 : f32
    %7 = vector.broadcast %cst_4 : f32 to vector<16x128xf32>
    %8 = arith.mulf %7, %4 : vector<16x128xf32>
    %cst_5 = arith.constant 1.000000e+00 : f32
    %9 = vector.broadcast %cst_5 : f32 to vector<16x128xf32>
    %10 = arith.subf %9, %8 : vector<16x128xf32>
    %cst_6 = arith.constant 1.53505671 : f32
    %11 = vector.broadcast %cst_6 : f32 to vector<16x128xf32>
    %12 = arith.mulf %11, %10 : vector<16x128xf32>
    %13 = math.exp %12 : vector<16x128xf32>
    %14 = arith.mulf %3, %3 : vector<16x128xf32>
    %15 = arith.addf %14, %13 : vector<16x128xf32>
    %16 = math.log %15 : vector<16x128xf32>
    %17 = arith.mulf %6, %16 : vector<16x128xf32>
    %18 = math.exp %17 : vector<16x128xf32>
    %c0_7 = arith.constant 0 : index
    %c0_8 = arith.constant 0 : index
    %19 = vector.load %arg4[%c0_7, %c0_8] : memref<8x128xf32, #tpu.memory_space<vmem>>, vector<8x128xf32>
    %20 = vector.shape_cast %18 : vector<16x128xf32> to vector<2x8x128xf32>
    %cst_9 = arith.constant dense<0.000000e+00> : vector<8x128xf32>
    %21 = vector.multi_reduction <add>, %20, %cst_9 [0] : vector<2x8x128xf32> to vector<8x128xf32>
    %22 = arith.addf %19, %21 : vector<8x128xf32>
    %c0_10 = arith.constant 0 : index
    %c0_11 = arith.constant 0 : index
    %23 = vector.load %arg4[%c0_10, %c0_11] : memref<8x128xf32, #tpu.memory_space<vmem>>, vector<8x128xf32>
    tpu.vector_store %arg4[%c0_10, %c0_11], %22 {strides = array<i32>} : memref<8x128xf32, #tpu.memory_space<vmem>>, vector<8x128xf32>,
    return
  }
  func.func @transform_0(%arg0: i32, %arg1: i32) -> (i32, i32) {
    %c1_i32 = arith.constant 1 : i32
    %0 = arith.muli %arg0, %c1_i32 : i32
    %1 = arith.addi %0, %arg1 : i32
    %c0_i32 = arith.constant 0 : i32
    %2 = arith.minsi %1, %c0_i32 : i32
    %c0_i32_0 = arith.constant 0 : i32
    %c0_i32_1 = arith.constant 0 : i32
    return %2, %c0_i32_0 : i32, i32
  }
  func.func @transform_1(%arg0: i32, %arg1: i32) -> (i32, i32) {
    %c1_i32 = arith.constant 1 : i32
    %0 = arith.muli %arg0, %c1_i32 : i32
    %1 = arith.addi %0, %arg1 : i32
    %c0_i32 = arith.constant 0 : i32
    %2 = arith.minsi %1, %c0_i32 : i32
    %c0_i32_0 = arith.constant 0 : i32
    %c0_i32_1 = arith.constant 0 : i32
    return %2, %c0_i32_0 : i32, i32
  }
  func.func @transform_2(%arg0: i32, %arg1: i32) -> (i32, i32) {
    %c0_i32 = arith.constant 0 : i32
    %c0_i32_0 = arith.constant 0 : i32
    return %arg0, %c0_i32 : i32, i32
  }
}

</mosaic_0001>

<llo_original>
// kernel: charbonnier_ada_pallas.1
$region0: #{charbonnier_ada_pallas.1}
  #allocation0 [shape = 'u32[]', space=smem, size = 0x4, offset = 0x4, fixed_abs, tag = 'smem constant byte address 0x4 - core index']
  #allocation1 [shape = 'u32[144,128]{1,0:T(1,128)}', space=vmem, size = 0x12000, scoped, tag = 'internal scratch']
  %s0 = inlined_call_operand.vmem [shape: f32[16,128], index: 0, kind: input, shape index: {}]
  %s1 = inlined_call_operand.vmem [shape: f32[16,128], index: 1, kind: input, shape index: {}]
  %s2 = inlined_call_operand.vmem [shape: f32[8,128], index: 2, kind: output, shape index: {}]
  %s3 = sld [smem:[#allocation0]]
  $region22: #{charbonnier_ada_pallas.1} parent=0
    _
  %s5 = ssub.s32 1, %s3
  %s6 = scalar_select 0, %s5, %s3
  // Predicated region
  $region2: #{charbonnier_ada_pallas.1} parent=0 // pred_check
    _
  $region3: #{charbonnier_ada_pallas.1} parent=0 // pred_check_branch
    %8 = sbr.rel (0) target = $region5
  $region4: #{charbonnier_ada_pallas.1} parent=0 // pred_region
    %s9 = sadd.s32 0, 0
    %p10 = scmp.lt.s32.totalorder %s9, 0
    %s11 = scalar_select %p10, %s9, 0
    %s12 = smul.u32 2, %s11
    %p13 = scmp.lt.s32.totalorder %s12, 1
    %s14 = scalar_select %p13, %s12, 1
    %s15 = smul.addr %s14, 8
    %s16 = scalar_lea.vmem %s0, %s15
    %s17 = sadd.s32 0, 0
    %p18 = scmp.lt.s32.totalorder %s17, 0
    %s19 = scalar_select %p18, %s17, 0
    %s20 = smul.u32 2, %s19
  $region5: #{charbonnier_ada_pallas.1} parent=0 // pred_fallthru
    _
  // Predicated region
  $region6: #{charbonnier_ada_pallas.1} parent=0 // pred_check
    _
  $region7: #{charbonnier_ada_pallas.1} parent=0 // pred_check_branch
    %22 = sbr.rel (0) target = $region9
  $region8: #{charbonnier_ada_pallas.1} parent=0 // pred_region
    %s23 = sadd.s32 0, 0
    %p24 = scmp.lt.s32.totalorder %s23, 0
    %s25 = scalar_select %p24, %s23, 0
    %s26 = smul.u32 2, %s25
    %p27 = scmp.lt.s32.totalorder %s26, 1
    %s28 = scalar_select %p27, %s26, 1
    %s29 = smul.addr %s28, 8
    %s30 = scalar_lea.vmem %s1, %s29
    %s31 = sadd.s32 0, 0
    %p32 = scmp.lt.s32.totalorder %s31, 0
    %s33 = scalar_select %p32, %s31, 0
    %s34 = smul.u32 2, %s33
  $region9: #{charbonnier_ada_pallas.1} parent=0 // pred_fallthru
    _
  %s35 = sadd.s32 0, 0
  %p36 = scmp.lt.s32.totalorder %s35, 0
  %s37 = scalar_select %p36, %s35, 0
  %s38 = smul.u32 2, %s37
  %p39 = scmp.lt.s32.totalorder %s38, 1
  %s40 = scalar_select %p39, %s38, 1
  %s41 = smul.addr %s40, 8
  %s42 = scalar_lea.vmem %s0, %s41
  %s43 = sadd.s32 0, 0
  %p44 = scmp.lt.s32.totalorder %s43, 0
  %s45 = scalar_select %p44, %s43, 0
  %s46 = smul.u32 2, %s45
  %p47 = scmp.lt.s32.totalorder %s46, 1
  %s48 = scalar_select %p47, %s46, 1
  %s49 = smul.addr %s48, 8
  %s50 = scalar_lea.vmem %s1, %s49
  %s51 = sadd.s32 0, 0
  %p52 = scmp.lt.s32.totalorder %s51, 0
  %s53 = scalar_select %p52, %s51, 0
  %s54 = smul.u32 2, %s53
  %p55 = scmp.lt.s32.totalorder %s54, 1
  %s56 = scalar_select %p55, %s54, 1
  %s57 = smul.addr %s56, 8
  %s58 = scalar_lea.vmem %s0, %s57
  %s59 = sadd.s32 0, 0
  %p60 = scmp.lt.s32.totalorder %s59, 0
  %s61 = scalar_select %p60, %s59, 0
  %s62 = smul.u32 2, %s61
  %s63 = sadd.s32 0, 0
  %p64 = scmp.lt.s32.totalorder %s63, 0
  %s65 = scalar_select %p64, %s63, 0
  %s66 = smul.u32 2, %s65
  %p67 = scmp.lt.s32.totalorder %s66, 1
  %s68 = scalar_select %p67, %s66, 1
  %s69 = smul.addr %s68, 8
  %s70 = scalar_lea.vmem %s1, %s69
  %s71 = sadd.s32 0, 0
  %p72 = scmp.lt.s32.totalorder %s71, 0
  %s73 = scalar_select %p72, %s71, 0
  %s74 = smul.u32 2, %s73
  %p75 = scmp.eq.s32.totalorder 0, 0
  // Predicated region
  $region10: #{charbonnier_ada_pallas.1} parent=0 // pred_check
    %p76 = pneg %p75
  $region11: #{charbonnier_ada_pallas.1} parent=0 // pred_check_branch
    %78 = sbr.rel (%p76) target = $region13
  $region12: #{charbonnier_ada_pallas.1} parent=0 // pred_region
    %79 = vst [vmem:[%s2] sm:$0xff] 0.0
  $region13: #{charbonnier_ada_pallas.1} parent=0 // pred_fallthru
    _
  %v80 = vld [vmem:[%s58] sm:$0xff]
  %v81 = vld [vmem:[%s58 + $0x8] sm:$0xff]
  %v82 = vld [vmem:[%s70] sm:$0xff]
  %v83 = vld [vmem:[%s70 + $0x8] sm:$0xff]
  %v84 = vmul.f32 %v82, 0.5
  %v85 = vmul.f32 %v83, 0.5
  %v86 = vmul.f32 %v82, 10.0
  %v87 = vmul.f32 %v83, 10.0
  %v88 = vsub.f32 1.0, %v86
  %v89 = vsub.f32 1.0, %v87
  %v90 = vmul.f32 %v88, 1.5350567
  %v91 = vmul.f32 %v89, 1.5350567
  %v92 = vmul.f32 %v90, 1.442695
  %v93 = vpow.pop %v92
  %v94 = vmul.f32 %v91, 1.442695
  %v95 = vpow.pop %v94
  %v96 = vmul.f32 %v80, %v80
  %v97 = vmul.f32 %v81, %v81
  %v98 = vadd.f32 %v96, %v93
  %v99 = vadd.f32 %v97, %v95
  %v100 = vlog2.pop %v98
  %v101 = vmul.f32 %v100, 0.6931472
  %v102 = vlog2.pop %v99
  %v103 = vmul.f32 %v102, 0.6931472
  %v104 = vmul.f32 %v84, %v101
  %v105 = vmul.f32 %v85, %v103
  %v106 = vmul.f32 %v104, 1.442695
  %v107 = vpow.pop %v106
  %v108 = vmul.f32 %v105, 1.442695
  %v109 = vpow.pop %v108
  %v110 = vld [vmem:[%s2] sm:$0xff]
  %v111 = vadd.f32 %v107, %v109
  %v112 = vadd.f32 %v110, %v111
  %113 = vst [vmem:[%s2] sm:$0xff] %v112
  // Predicated region
  $region14: #{charbonnier_ada_pallas.1} parent=0 // pred_check
    _
  $region15: #{charbonnier_ada_pallas.1} parent=0 // pred_check_branch
    %115 = sbr.rel (0) target = $region17
  $region16: #{charbonnier_ada_pallas.1} parent=0 // pred_region
    _
  $region17: #{charbonnier_ada_pallas.1} parent=0 // pred_fallthru
    _
  // Predicated region
  $region18: #{charbonnier_ada_pallas.1} parent=0 // pred_check
    _
  $region19: #{charbonnier_ada_pallas.1} parent=0 // pred_check_branch
    %117 = sbr.rel (0) target = $region21
  $region20: #{charbonnier_ada_pallas.1} parent=0 // pred_region
    _
  $region21: #{charbonnier_ada_pallas.1} parent=0 // pred_fallthru
    _

</llo_original>
